<compile_context>
chip_gen: v7x
topology: tpu7x:2x2x1
jax: 0.10.0
libtpu: 0.0.40
codegen_flags: <defaults>
</compile_context>

<pallas_src>
import functools
from types import SimpleNamespace

import numpy as np

import jax
import jax.numpy as jnp
from jax import lax
from jax.experimental import pallas as pl
from jax.experimental.pallas import tpu as pltpu

# Lane-dense spatial tile for the dyeing kernels.  2048 lanes amortizes the
# per-grid-step overhead while keeping the per-tile working set tiny
# (< 1 MiB even with double-buffering) — safe on v5e/v6e/v7x VMEM budgets.
_TILE_P_MAX = 2048


# ----------------------------------------------------------------------------
# Kernel 1: instance edge map (get_edges) — roll-based, lane-dense store.
# ----------------------------------------------------------------------------
def _edge_kernel(inst_ref, edge_ref):
    inst = inst_ref[...]                                   # (H, W) int32
    H, W = inst.shape
    row = lax.broadcasted_iota(jnp.int32, (H, W), 0)
    col = lax.broadcasted_iota(jnp.int32, (H, W), 1)

    left = pltpu.roll(inst, 1, 1)                          # inst[h, w-1]  (wraps)
    right = pltpu.roll(inst, W - 1, 1)                     # inst[h, w+1]  (wraps)
    up = pltpu.roll(inst, 1, 0)                            # inst[h-1, w]  (wraps)
    down = pltpu.roll(inst, H - 1, 0)                      # inst[h+1, w]  (wraps)

    edge = (((inst != left) & (col > 0))
            | ((inst != right) & (col < W - 1))
            | ((inst != up) & (row > 0))
            | ((inst != down) & (row < H - 1)))
    edge_ref[...] = edge.astype(jnp.float32)


def _edges_pallas(inst_hw):
    # Edge map is memory-light ((H,W) int32 in, (H,W) f32 out), so a single
    # full-array block is fine even at large resolutions.
    H, W = inst_hw.shape
    return pl.pallas_call(
        _edge_kernel,
        out_shape=jax.ShapeDtypeStruct((H, W), jnp.float32),
        grid=(1,),
        in_specs=[pl.BlockSpec((H, W), lambda i: (0, 0))],
        out_specs=pl.BlockSpec((H, W), lambda i: (0, 0)),
    )(inst_hw)


# ----------------------------------------------------------------------------
# Kernel 2: per-region style extraction over the reference image (P-tiled
# reduction) + fold of the 1x1 output-conv weight into the style matrix.
# ----------------------------------------------------------------------------
def _style_reduce_kernel(*refs, nc, c, with_edge):
    if with_edge:
        label_ref, edge_ref, img_ref, w_ref, woh_ref, we_ref, acc_oh, acc_e = refs
    else:
        label_ref, img_ref, w_ref, woh_ref, acc_oh = refs
        edge_ref = we_ref = acc_e = None

    @pl.when(pl.program_id(0) == 0)
    def _init():
        acc_oh[...] = jnp.zeros_like(acc_oh)
        if with_edge:
            acc_e[...] = jnp.zeros_like(acc_e)

    label = label_ref[...]                                 # (1, TP) int32
    img = img_ref[...]                                     # (C, TP) f32
    tp = label.shape[-1]

    # one-hot built on the fly — never hits HBM
    ch = lax.broadcasted_iota(jnp.int32, (nc, tp), 0)
    onehot = (label == ch).astype(jnp.float32)             # (nc, TP)

    # append a ones row so the pixel counts fall out of the same MXU pass
    ones = jnp.ones((1, tp), jnp.float32)
    img_aug = jnp.concatenate([img, ones], axis=0)         # (C+1, TP)

    acc_oh[...] += lax.dot_general(
        img_aug, onehot, (((1,), (1,)), ((), ())),
        preferred_element_type=jnp.float32)                # (C+1, nc)

    if with_edge:
        edge = edge_ref[...]                               # (1, TP) f32
        acc_e[...] += jnp.sum(img_aug * edge, axis=1, keepdims=True)   # (C+1, 1)

    @pl.when(pl.program_id(0) == pl.num_programs(0) - 1)
    def _finalize():
        w = w_ref[...]                                     # (C, C)
        acc = acc_oh[...]
        style_oh = acc[:c] / jnp.maximum(acc[c:c + 1], 1.0)            # (C, nc)
        woh_ref[...] = jnp.dot(w, style_oh, preferred_element_type=jnp.float32)
        if with_edge:
            acce = acc_e[...]
            style_e = acce[:c] / jnp.maximum(acce[c:c + 1], 1.0)       # (C, 1)
            we_ref[...] = jnp.dot(w, style_e, preferred_element_type=jnp.float32)


def _style_reduce_pallas(label_flat, edge_flat, img_flat, w_head, nc, tile_p):
    with_edge = edge_flat is not None
    C = img_flat.shape[0]
    p_pad = label_flat.shape[-1]
    assert p_pad % tile_p == 0
    grid = (p_pad // tile_p,)

    kernel = functools.partial(_style_reduce_kernel, nc=nc, c=C, with_edge=with_edge)

    in_specs = [pl.BlockSpec((1, tile_p), lambda i: (0, i))]
    inputs = [label_flat]
    if with_edge:
        in_specs.append(pl.BlockSpec((1, tile_p), lambda i: (0, i)))
        inputs.append(edge_flat)
    in_specs.append(pl.BlockSpec((C, tile_p), lambda i: (0, i)))
    inputs.append(img_flat)
    in_specs.append(pl.BlockSpec((C, C), lambda i: (0, 0)))
    inputs.append(w_head)

    out_shape = [jax.ShapeDtypeStruct((C, nc), jnp.float32)]
    out_specs = [pl.BlockSpec((C, nc), lambda i: (0, 0))]
    scratch = [pltpu.VMEM((C + 1, nc), jnp.float32)]
    if with_edge:
        out_shape.append(jax.ShapeDtypeStruct((C, 1), jnp.float32))
        out_specs.append(pl.BlockSpec((C, 1), lambda i: (0, 0)))
        scratch.append(pltpu.VMEM((C + 1, 1), jnp.float32))

    return pl.pallas_call(
        kernel,
        out_shape=tuple(out_shape),
        grid=grid,
        in_specs=in_specs,
        out_specs=tuple(out_specs),
        scratch_shapes=tuple(scratch),
        compiler_params=pltpu.CompilerParams(dimension_semantics=("arbitrary",)),
    )(*inputs)


# ----------------------------------------------------------------------------
# Kernel 3: region repainting of the source semantics + 1x1 conv head + tanh
# (P-tiled, "parallel" so the two v7x TensorCores split the work).
# ----------------------------------------------------------------------------
def _paint_kernel(*refs, nc, with_edge):
    if with_edge:
        label_ref, edge_ref, woh_ref, we_ref, b_ref, out_ref = refs
    else:
        label_ref, woh_ref, b_ref, out_ref = refs
        edge_ref = we_ref = None

    label = label_ref[...]                                 # (1, TP) int32
    tp = label.shape[-1]
    ch = lax.broadcasted_iota(jnp.int32, (nc, tp), 0)
    onehot = (label == ch).astype(jnp.float32)             # (nc, TP)

    # reassociated head: (W @ style) already folded into woh / we
    out = jnp.dot(woh_ref[...], onehot, preferred_element_type=jnp.float32)  # (C, TP)
    if with_edge:
        out = out + we_ref[...] * edge_ref[...]            # (C,1)*(1,TP)
    out_ref[...] = jnp.tanh(out + b_ref[...])


def _paint_pallas(label_flat, edge_flat, w_oh, w_e, b, nc, tile_p):
    with_edge = edge_flat is not None
    C = w_oh.shape[0]
    p_pad = label_flat.shape[-1]
    assert p_pad % tile_p == 0
    grid = (p_pad // tile_p,)

    kernel = functools.partial(_paint_kernel, nc=nc, with_edge=with_edge)

    in_specs = [pl.BlockSpec((1, tile_p), lambda i: (0, i))]
    inputs = [label_flat]
    if with_edge:
        in_specs.append(pl.BlockSpec((1, tile_p), lambda i: (0, i)))
        inputs.append(edge_flat)
    in_specs.append(pl.BlockSpec((C, nc), lambda i: (0, 0)))
    inputs.append(w_oh)
    if with_edge:
        in_specs.append(pl.BlockSpec((C, 1), lambda i: (0, 0)))
        inputs.append(w_e)
    in_specs.append(pl.BlockSpec((C, 1), lambda i: (0, 0)))
    inputs.append(b)

    return pl.pallas_call(
        kernel,
        out_shape=jax.ShapeDtypeStruct((C, p_pad), jnp.float32),
        grid=grid,
        in_specs=in_specs,
        out_specs=pl.BlockSpec((C, tile_p), lambda i: (0, i)),
        compiler_params=pltpu.CompilerParams(dimension_semantics=("parallel",)),
    )(*inputs)


# ----------------------------------------------------------------------------
# Wrapper helpers
# ----------------------------------------------------------------------------
def _tile_and_pad(p):
    tile = min(((p + 127) // 128) * 128, _TILE_P_MAX)      # lane-dense multiple of 128
    p_pad = ((p + tile - 1) // tile) * tile
    return tile, p_pad


def _pad_lanes(x, p_pad, fill=0):
    pad = p_pad - x.shape[-1]
    if pad == 0:
        return x
    return jnp.pad(x, ((0, 0), (0, pad)), constant_values=fill)


# ----------------------------------------------------------------------------
# Model wrapper mirroring Pix2PixModel
# ----------------------------------------------------------------------------
class Pix2PixModelPallas:
    def __init__(self, opt):
        self.opt = opt
        # deterministic "generator head" parameters (netG output conv surrogate)
        C = 3
        self.w_head = (jnp.eye(C, dtype=jnp.float32)
                       + 0.01 * jnp.arange(C * C, dtype=jnp.float32).reshape(C, C))
        self.b_head = jnp.zeros((C, 1), dtype=jnp.float32)
        # TODO(synk): netD / netE (discriminator / VAE encoder) are train-only and
        # are not instantiated here.

    def preprocess_input(self, data):
        # Mirrors Pix2PixModel.preprocess_input, but keeps the semantics in the
        # fused form (int32 label plane + instance edge plane): the one-hot
        # scatter is done on the fly inside the dyeing kernels so that the
        # (nc+1, H, W) float one-hot never round-trips HBM.
        label_map = data["label"].astype(jnp.int32)        # (1, H, W), like .long()
        label_map = label_map[None]                        # unsqueeze(0) -> (1,1,H,W)
        bs, _, h, w = label_map.shape
        assert bs == 1, "batched inputs unsupported"       # TODO(synk): batch > 1

        label_flat = label_map.reshape(1, h * w)
        if not self.opt.no_instance:
            inst_hw = data["instance"].astype(jnp.int32).reshape(h, w)
            edge_flat = _edges_pallas(inst_hw).reshape(1, h * w)
        else:
            edge_flat = None
        return (label_flat, edge_flat, (h, w)), data["image"]

    def forward(self, src_data, ref_data, opt):
        if opt.mode != "custom":
            # TODO(synk): 'black/brown/...' color_dyeing and 'save_color' pickle
            # I/O require the real SEAN netG / filesystem access.
            raise ValueError("only |custom| mode is implemented in this script")

        (src_label, src_edge, (h, w)), _src_image = self.preprocess_input(src_data)
        (ref_label, ref_edge, (rh, rw)), ref_image = self.preprocess_input(ref_data)

        nc = (self.opt.label_nc + 1 if self.opt.contain_dontcare_label
              else self.opt.label_nc)
        C = 3

        # ---- phase 1: per-region style codes from the reference image --------
        rp = rh * rw
        rtile, rp_pad = _tile_and_pad(rp)
        ref_label_p = _pad_lanes(ref_label, rp_pad, fill=-1)   # -1 matches no region
        ref_edge_p = None if ref_edge is None else _pad_lanes(ref_edge, rp_pad)
        ref_img_p = _pad_lanes(ref_image.reshape(C, rp), rp_pad)

        styles = _style_reduce_pallas(ref_label_p, ref_edge_p, ref_img_p,
                                      self.w_head, nc, rtile)
        w_oh = styles[0]                                   # (C, nc)  = w_head @ style
        w_e = styles[1] if ref_edge is not None else None  # (C, 1)

        # ---- phase 2: repaint the source semantics + head + tanh -------------
        sp = h * w
        stile, sp_pad = _tile_and_pad(sp)
        src_label_p = _pad_lanes(src_label, sp_pad, fill=-1)
        src_edge_p = None if src_edge is None else _pad_lanes(src_edge, sp_pad)

        fake_flat = _paint_pallas(src_label_p, src_edge_p, w_oh, w_e,
                                  self.b_head, nc, stile)  # (C, sp_pad)
        return fake_flat[:, :sp].reshape(1, C, h, w)       # NCHW fake image


# ----------------------------------------------------------------------------
# Pure-JAX reference (matches the un-fused math of the original script)
# ----------------------------------------------------------------------------
def _reference_forward(model, src_data, ref_data, opt):
    nc = opt.label_nc + 1 if opt.contain_dontcare_label else opt.label_nc

    def sem(data):
        H, W = data["label"].shape[-2:]
        lab = data["label"].astype(jnp.int32).reshape(-1)
        oh = jax.nn.one_hot(lab, nc, dtype=jnp.float32).T.reshape(nc, H, W)
        planes = [oh]
        if not opt.no_instance:
            t = data["instance"].astype(jnp.int32).reshape(H, W)
            e = jnp.zeros((H, W), bool)
            dx = t[:, 1:] != t[:, :-1]
            e = e.at[:, 1:].set(e[:, 1:] | dx)
            e = e.at[:, :-1].set(e[:, :-1] | dx)
            dy = t[1:, :] != t[:-1, :]
            e = e.at[1:, :].set(e[1:, :] | dy)
            e = e.at[:-1, :].set(e[:-1, :] | dy)
            planes.append(e.astype(jnp.float32)[None])
        return jnp.concatenate(planes, axis=0)

    src_sem = sem(src_data)
    ref_sem = sem(ref_data)
    K, H, W = src_sem.shape
    rK, rH, rW = ref_sem.shape
    ref_img = ref_data["image"].reshape(3, rH * rW)
    rs = ref_sem.reshape(rK, rH * rW)
    num = ref_img @ rs.T
    cnt = jnp.sum(rs, axis=1)[None, :]
    style = num / jnp.maximum(cnt, 1.0)
    painted = style @ src_sem.reshape(K, H * W)
    out = jnp.tanh(model.w_head @ painted + model.b_head)
    return out.reshape(1, 3, H, W)


# ----------------------------------------------------------------------------
if __name__ == "__main__":
    H = W = 64   # small, but large enough to exercise the P-tiling (P=4096 -> 2 tiles)
    opt = SimpleNamespace(
        mode="custom",
        label_nc=19,
        contain_dontcare_label=False,
        no_instance=False,
        gpu_ids=[],
        isTrain=False,
        use_vae=False,
    )

    key = jax.random.PRNGKey(0)
    k1, k2, k3, k4, k5, k6 = jax.random.split(key, 6)
    src_data = {
        "label":    jax.random.randint(k1, (1, H, W), 0, opt.label_nc, dtype=jnp.int32),
        "instance": jax.random.randint(k2, (1, 1, H, W), 0, 4, dtype=jnp.int32),
        "image":    jax.random.uniform(k3, (1, 3, H, W), minval=-1.0, maxval=1.0,
                                       dtype=jnp.float32),
        "path":     ["synthetic_src.png"],
    }
    ref_data = {
        "label":    jax.random.randint(k4, (1, H, W), 0, opt.label_nc, dtype=jnp.int32),
        "instance": jax.random.randint(k5, (1, 1, H, W), 0, 4, dtype=jnp.int32),
        "image":    jax.random.uniform(k6, (1, 3, H, W), minval=-1.0, maxval=1.0,
                                       dtype=jnp.float32),
        "path":     ["synthetic_ref.png"],
    }

    model = Pix2PixModelPallas(opt)
    fake_image = model.forward(src_data, ref_data, opt)
    fake_image = jax.block_until_ready(fake_image)

    assert fake_image.shape == (1, 3, H, W)
    assert fake_image.dtype == jnp.float32
    assert bool(jnp.all(jnp.isfinite(fake_image)))

    ref_out = jax.block_until_ready(_reference_forward(model, src_data, ref_data, opt))
    np.testing.assert_allclose(np.asarray(fake_image), np.asarray(ref_out),
                               rtol=2e-2, atol=2e-2)
    print("KERNEL_OK")
</pallas_src>

<mosaic_0001>
module attributes {stable_mosaic.version = 11 : i64} {
  func.func @_edge_kernel(%arg0: i32, %arg1: memref<64x64xi32, #tpu.memory_space<vmem>>, %arg2: memref<64x64xf32, #tpu.memory_space<vmem>>) attributes {dimension_semantics = [#tpu.dimension_semantics<arbitrary>], iteration_bounds = array<i64: 1>, scalar_prefetch = 0 : i64, scratch_operands = 0 : i64, tpu.core_type = #tpu.core_type<tc>, window_params = [{pipeline_mode = #tpu.pipeline_mode<synchronous>, transform_indices = @transform_0, window_bounds = array<i64: 64, 64>}, {pipeline_mode = #tpu.pipeline_mode<synchronous>, transform_indices = @transform_1, window_bounds = array<i64: 64, 64>}]} {
    %c0 = arith.constant 0 : index
    %c0_0 = arith.constant 0 : index
    %0 = vector.load %arg1[%c0, %c0_0] : memref<64x64xi32, #tpu.memory_space<vmem>>, vector<64x64xi32>
    %1 = tpu.iota {dimensions = array<i32: 0>} : vector<64x64xi32>
    %2 = tpu.iota {dimensions = array<i32: 1>} : vector<64x64xi32>
    %c1_i32 = arith.constant 1 : i32
    %3 = tpu.dynamic_rotate %0 by %c1_i32 dim 1 : vector<64x64xi32>, i32 -> vector<64x64xi32>
    %c63_i32 = arith.constant 63 : i32
    %4 = tpu.dynamic_rotate %0 by %c63_i32 dim 1 : vector<64x64xi32>, i32 -> vector<64x64xi32>
    %c1_i32_1 = arith.constant 1 : i32
    %5 = tpu.dynamic_rotate %0 by %c1_i32_1 dim 0 : vector<64x64xi32>, i32 -> vector<64x64xi32>
    %c63_i32_2 = arith.constant 63 : i32
    %6 = tpu.dynamic_rotate %0 by %c63_i32_2 dim 0 : vector<64x64xi32>, i32 -> vector<64x64xi32>
    %7 = arith.cmpi ne, %0, %3 : vector<64x64xi32>
    %c0_i32 = arith.constant 0 : i32
    %8 = vector.broadcast %c0_i32 : i32 to vector<64x64xi32>
    %9 = arith.cmpi sgt, %2, %8 : vector<64x64xi32>
    %10 = arith.andi %7, %9 : vector<64x64xi1>
    %11 = arith.cmpi ne, %0, %4 : vector<64x64xi32>
    %c63_i32_3 = arith.constant 63 : i32
    %12 = vector.broadcast %c63_i32_3 : i32 to vector<64x64xi32>
    %13 = arith.cmpi slt, %2, %12 : vector<64x64xi32>
    %14 = arith.andi %11, %13 : vector<64x64xi1>
    %15 = arith.ori %10, %14 : vector<64x64xi1>
    %16 = arith.cmpi ne, %0, %5 : vector<64x64xi32>
    %c0_i32_4 = arith.constant 0 : i32
    %17 = vector.broadcast %c0_i32_4 : i32 to vector<64x64xi32>
    %18 = arith.cmpi sgt, %1, %17 : vector<64x64xi32>
    %19 = arith.andi %16, %18 : vector<64x64xi1>
    %20 = arith.ori %15, %19 : vector<64x64xi1>
    %21 = arith.cmpi ne, %0, %6 : vector<64x64xi32>
    %c63_i32_5 = arith.constant 63 : i32
    %22 = vector.broadcast %c63_i32_5 : i32 to vector<64x64xi32>
    %23 = arith.cmpi slt, %1, %22 : vector<64x64xi32>
    %24 = arith.andi %21, %23 : vector<64x64xi1>
    %25 = arith.ori %20, %24 : vector<64x64xi1>
    %26 = arith.extui %25 : vector<64x64xi1> to vector<64x64xi32>
    %27 = arith.sitofp %26 : vector<64x64xi32> to vector<64x64xf32>
    %c0_6 = arith.constant 0 : index
    %c0_7 = arith.constant 0 : index
    %28 = vector.load %arg2[%c0_6, %c0_7] : memref<64x64xf32, #tpu.memory_space<vmem>>, vector<64x64xf32>
    tpu.vector_store %arg2[%c0_6, %c0_7], %27 {strides = array<i32>} : memref<64x64xf32, #tpu.memory_space<vmem>>, vector<64x64xf32>,
    return
  }
  func.func @transform_0(%arg0: i32) -> (i32, i32) {
    %c0_i32 = arith.constant 0 : i32
    %c0_i32_0 = arith.constant 0 : i32
    %c0_i32_1 = arith.constant 0 : i32
    return %c0_i32, %c0_i32_0 : i32, i32
  }
  func.func @transform_1(%arg0: i32) -> (i32, i32) {
    %c0_i32 = arith.constant 0 : i32
    %c0_i32_0 = arith.constant 0 : i32
    %c0_i32_1 = arith.constant 0 : i32
    return %c0_i32, %c0_i32_0 : i32, i32
  }
}

</mosaic_0001>

<llo_original>
// kernel: tpu_custom_call.1
$region0: #{tpu_custom_call.1}
  #allocation0 [shape = 'u32[]', space=smem, size = 0x4, offset = 0x4, fixed_abs, tag = 'smem constant byte address 0x4 - core index']
  #allocation1 [shape = 'u32[144,128]{1,0:T(1,128)}', space=vmem, size = 0x12000, scoped, tag = 'internal scratch']
  %s0 = inlined_call_operand.hbm [shape: s32[64,64], index: 0, kind: input, shape index: {}]
  %s1 = inlined_call_operand.hbm [shape: f32[64,64], index: 1, kind: output, shape index: {}]
  %s2 = sld [smem:[#allocation0]]
  $region18: #{tpu_custom_call.1} parent=0
    _
  %s4 = ssub.s32 1, %s2
  %s5 = scalar_select 0, %s4, %s2
  $region1: #{tpu_custom_call.1} parent=0
    #allocation2 [shape = 'u8[32768]{0}', space=vmem, size = 0x8000, scoped, tag = 'input window, operand 0, single buffered']
    #allocation3 [shape = 's32[1]{0}', space=sflag, size = 0x4, scoped, tag = 'scoped memory for tpu_custom_call.1']
    #allocation4 [shape = 's32[1]{0}', space=sflag, size = 0x4, scoped, tag = 'scoped memory for tpu_custom_call.1']
    #allocation5 [shape = 'u8[32768]{0}', space=vmem, size = 0x8000, scoped, tag = 'output window, operand 0, single buffered']
    %6 = vsyncpa [#allocation3], 0
    %7 = vsyncpa [#allocation4], 0
    // Predicated region
    $region2: #{tpu_custom_call.1} parent=1 // pred_check
      _
    $region3: #{tpu_custom_call.1} parent=1 // pred_check_branch
      %9 = sbr.rel (0) target = $region5
    $region4: #{tpu_custom_call.1} parent=1 // pred_region
      %s11 = ssub.s32 1024, 1024
      %12 = vsyncadd [#allocation3], %s11
      %s13 = sshll.u32 [#allocation2], 4
      %s14 = int_to_ptr.vmem [resolvable:$true] %s13
      %19 = dma.hbm_to_vmem [thread:$0]  %s0, 1024, %s14, [#allocation3], 128, 128, 8
    $region5: #{tpu_custom_call.1} parent=1 // pred_fallthru
      _
    // Predicated region
    $region6: #{tpu_custom_call.1} parent=1 // pred_check
      _
    $region7: #{tpu_custom_call.1} parent=1 // pred_check_branch
      %21 = sbr.rel (0) target = $region9
    $region8: #{tpu_custom_call.1} parent=1 // pred_region
      %22 = dma.done [#allocation3], 1024
    $region9: #{tpu_custom_call.1} parent=1 // pred_fallthru
      _
    %v23 = vld [vmem:[#allocation2] sm:$0xff]
    %v24 = vld [vmem:[#allocation2 + $0x8] sm:$0xff]
    %v25 = vld [vmem:[#allocation2 + $0x10] sm:$0xff]
    %v26 = vld [vmem:[#allocation2 + $0x18] sm:$0xff]
    %v27 = vld [vmem:[#allocation2 + $0x20] sm:$0xff]
    %v28 = vld [vmem:[#allocation2 + $0x28] sm:$0xff]
    %v29 = vld [vmem:[#allocation2 + $0x30] sm:$0xff]
    %v30 = vld [vmem:[#allocation2 + $0x38] sm:$0xff]
    %v31 = vlaneseq
    %v32 = vshrl.u32 %v31, 7
    %v33 = vadd.s32 %v32, 8
    %v34 = vadd.s32 %v32, 16
    %v35 = vadd.s32 %v32, 24
    %v36 = vadd.s32 %v32, 32
    %v37 = vadd.s32 %v32, 40
    %v38 = vadd.s32 %v32, 48
    %v39 = vadd.s32 %v32, 56
    %v40 = vlaneseq
    %v41 = vand.u32 %v40, 127
    %vm42 = vcmask 1048064
    %43 = vrot.lane.b32.xlu0 %v23, 64
    %v44 = vpop.permute.xlu0 %43
    %v45 = vsel %vm42, %v44, %v23
    %46 = vrot.lane.b32.xlu0 %v24, 64
    %v47 = vpop.permute.xlu0 %46
    %v48 = vsel %vm42, %v47, %v24
    %49 = vrot.lane.b32.xlu0 %v25, 64
    %v50 = vpop.permute.xlu0 %49
    %v51 = vsel %vm42, %v50, %v25
    %52 = vrot.lane.b32.xlu0 %v26, 64
    %v53 = vpop.permute.xlu0 %52
    %v54 = vsel %vm42, %v53, %v26
    %55 = vrot.lane.b32.xlu0 %v27, 64
    %v56 = vpop.permute.xlu0 %55
    %v57 = vsel %vm42, %v56, %v27
    %58 = vrot.lane.b32.xlu0 %v28, 64
    %v59 = vpop.permute.xlu0 %58
    %v60 = vsel %vm42, %v59, %v28
    %61 = vrot.lane.b32.xlu0 %v29, 64
    %v62 = vpop.permute.xlu0 %61
    %v63 = vsel %vm42, %v62, %v29
    %64 = vrot.lane.b32.xlu0 %v30, 64
    %v65 = vpop.permute.xlu0 %64
    %v66 = vsel %vm42, %v65, %v30
    %67 = vrot.lane.b32.xlu0 %v45, 64
    %v68 = vpop.permute.xlu0 %67
    %69 = vrot.lane.b32.xlu0 %v48, 64
    %v70 = vpop.permute.xlu0 %69
    %71 = vrot.lane.b32.xlu0 %v51, 64
    %v72 = vpop.permute.xlu0 %71
    %73 = vrot.lane.b32.xlu0 %v54, 64
    %v74 = vpop.permute.xlu0 %73
    %75 = vrot.lane.b32.xlu0 %v57, 64
    %v76 = vpop.permute.xlu0 %75
    %77 = vrot.lane.b32.xlu0 %v60, 64
    %v78 = vpop.permute.xlu0 %77
    %79 = vrot.lane.b32.xlu0 %v63, 64
    %v80 = vpop.permute.xlu0 %79
    %81 = vrot.lane.b32.xlu0 %v66, 64
    %v82 = vpop.permute.xlu0 %81
    %v83 = vsel %vm42, %v68, %v23
    %v84 = vsel %vm42, %v70, %v24
    %v85 = vsel %vm42, %v72, %v25
    %v86 = vsel %vm42, %v74, %v26
    %v87 = vsel %vm42, %v76, %v27
    %v88 = vsel %vm42, %v78, %v28
    %v89 = vsel %vm42, %v80, %v29
    %v90 = vsel %vm42, %v82, %v30
    %v91 = vrot.slane %v23, 7
    %v92 = vrot.slane %v24, 7
    %v93 = vrot.slane %v25, 7
    %v94 = vrot.slane %v26, 7
    %v95 = vrot.slane %v27, 7
    %v96 = vrot.slane %v28, 7
    %v97 = vrot.slane %v29, 7
    %v98 = vrot.slane %v30, 7
    %vm99 = vcmp.lt.s32.totalorder %v32, 1
    %v100 = vsel %vm99, %v97, %v98
    %v101 = vsel %vm99, %v96, %v97
    %v102 = vsel %vm99, %v95, %v96
    %v103 = vsel %vm99, %v94, %v95
    %v104 = vsel %vm99, %v93, %v94
    %v105 = vsel %vm99, %v92, %v93
    %v106 = vsel %vm99, %v91, %v92
    %v107 = vsel %vm99, %v98, %v91
    %v108 = vrot.slane %v23, 1
    %v109 = vrot.slane %v24, 1
    %v110 = vrot.slane %v25, 1
    %v111 = vrot.slane %v26, 1
    %v112 = vrot.slane %v27, 1
    %v113 = vrot.slane %v28, 1
    %v114 = vrot.slane %v29, 1
    %v115 = vrot.slane %v30, 1
    %vm116 = vcmp.lt.s32.totalorder %v32, 7
    %v117 = vsel %vm116, %v114, %v115
    %v118 = vsel %vm116, %v113, %v114
    %v119 = vsel %vm116, %v112, %v113
    %v120 = vsel %vm116, %v111, %v112
    %v121 = vsel %vm116, %v110, %v111
    %v122 = vsel %vm116, %v109, %v110
    %v123 = vsel %vm116, %v108, %v109
    %v124 = vsel %vm116, %v115, %v108
    %125 = vrot.lane.b32.xlu0 %v83, 65
    %v126 = vpop.permute.xlu0 %125
    %127 = vrot.lane.b32.xlu0 %v84, 65
    %v128 = vpop.permute.xlu0 %127
    %129 = vrot.lane.b32.xlu0 %v85, 65
    %v130 = vpop.permute.xlu0 %129
    %131 = vrot.lane.b32.xlu0 %v86, 65
    %v132 = vpop.permute.xlu0 %131
    %133 = vrot.lane.b32.xlu0 %v87, 65
    %v134 = vpop.permute.xlu0 %133
    %135 = vrot.lane.b32.xlu0 %v88, 65
    %v136 = vpop.permute.xlu0 %135
    %137 = vrot.lane.b32.xlu0 %v89, 65
    %v138 = vpop.permute.xlu0 %137
    %139 = vrot.lane.b32.xlu0 %v90, 65
    %v140 = vpop.permute.xlu0 %139
    %vm141 = vcmp.ne.s32.totalorder %v23, %v126
    %vm142 = vcmp.ne.s32.totalorder %v24, %v128
    %vm143 = vcmp.ne.s32.totalorder %v25, %v130
    %vm144 = vcmp.ne.s32.totalorder %v26, %v132
    %vm145 = vcmp.ne.s32.totalorder %v27, %v134
    %vm146 = vcmp.ne.s32.totalorder %v28, %v136
    %vm147 = vcmp.ne.s32.totalorder %v29, %v138
    %vm148 = vcmp.ne.s32.totalorder %v30, %v140
    %vm149 = vcmp.gt.s32.totalorder %v41, 0
    %vm150 = vmand %vm141, %vm149
    %vm151 = vmand %vm142, %vm149
    %vm152 = vmand %vm143, %vm149
    %vm153 = vmand %vm144, %vm149
    %vm154 = vmand %vm145, %vm149
    %vm155 = vmand %vm146, %vm149
    %vm156 = vmand %vm147, %vm149
    %vm157 = vmand %vm148, %vm149
    %158 = vrot.lane.b32.xlu0 %v83, 127
    %v159 = vpop.permute.xlu0 %158
    %160 = vrot.lane.b32.xlu0 %v84, 127
    %v161 = vpop.permute.xlu0 %160
    %162 = vrot.lane.b32.xlu0 %v85, 127
    %v163 = vpop.permute.xlu0 %162
    %164 = vrot.lane.b32.xlu0 %v86, 127
    %v165 = vpop.permute.xlu0 %164
    %166 = vrot.lane.b32.xlu0 %v87, 127
    %v167 = vpop.permute.xlu0 %166
    %168 = vrot.lane.b32.xlu0 %v88, 127
    %v169 = vpop.permute.xlu0 %168
    %170 = vrot.lane.b32.xlu0 %v89, 127
    %v171 = vpop.permute.xlu0 %170
    %172 = vrot.lane.b32.xlu0 %v90, 127
    %v173 = vpop.permute.xlu0 %172
    %vm174 = vcmp.ne.s32.totalorder %v23, %v159
    %vm175 = vcmp.ne.s32.totalorder %v24, %v161
    %vm176 = vcmp.ne.s32.totalorder %v25, %v163
    %vm177 = vcmp.ne.s32.totalorder %v26, %v165
    %vm178 = vcmp.ne.s32.totalorder %v27, %v167
    %vm179 = vcmp.ne.s32.totalorder %v28, %v169
    %vm180 = vcmp.ne.s32.totalorder %v29, %v171
    %vm181 = vcmp.ne.s32.totalorder %v30, %v173
    %vm182 = vcmp.lt.s32.totalorder %v41, 63
    %vm183 = vmand %vm174, %vm182
    %vm184 = vmand %vm175, %vm182
    %vm185 = vmand %vm176, %vm182
    %vm186 = vmand %vm177, %vm182
    %vm187 = vmand %vm178, %vm182
    %vm188 = vmand %vm179, %vm182
    %vm189 = vmand %vm180, %vm182
    %vm190 = vmand %vm181, %vm182
    %vm191 = vmor %vm150, %vm183
    %vm192 = vmor %vm151, %vm184
    %vm193 = vmor %vm152, %vm185
    %vm194 = vmor %vm153, %vm186
    %vm195 = vmor %vm154, %vm187
    %vm196 = vmor %vm155, %vm188
    %vm197 = vmor %vm156, %vm189
    %vm198 = vmor %vm157, %vm190
    %vm199 = vcmp.ne.s32.totalorder %v23, %v107
    %vm200 = vcmp.ne.s32.totalorder %v24, %v106
    %vm201 = vcmp.ne.s32.totalorder %v25, %v105
    %vm202 = vcmp.ne.s32.totalorder %v26, %v104
    %vm203 = vcmp.ne.s32.totalorder %v27, %v103
    %vm204 = vcmp.ne.s32.totalorder %v28, %v102
    %vm205 = vcmp.ne.s32.totalorder %v29, %v101
    %vm206 = vcmp.ne.s32.totalorder %v30, %v100
    %vm207 = vcmp.gt.s32.totalorder %v32, 0
    %vm208 = vcmp.gt.s32.totalorder %v33, 0
    %vm209 = vcmp.gt.s32.totalorder %v34, 0
    %vm210 = vcmp.gt.s32.totalorder %v35, 0
    %vm211 = vcmp.gt.s32.totalorder %v36, 0
    %vm212 = vcmp.gt.s32.totalorder %v37, 0
    %vm213 = vcmp.gt.s32.totalorder %v38, 0
    %vm214 = vcmp.gt.s32.totalorder %v39, 0
    %vm215 = vmand %vm199, %vm207
    %vm216 = vmand %vm200, %vm208
    %vm217 = vmand %vm201, %vm209
    %vm218 = vmand %vm202, %vm210
    %vm219 = vmand %vm203, %vm211
    %vm220 = vmand %vm204, %vm212
    %vm221 = vmand %vm205, %vm213
    %vm222 = vmand %vm206, %vm214
    %vm223 = vmor %vm191, %vm215
    %vm224 = vmor %vm192, %vm216
    %vm225 = vmor %vm193, %vm217
    %vm226 = vmor %vm194, %vm218
    %vm227 = vmor %vm195, %vm219
    %vm228 = vmor %vm196, %vm220
    %vm229 = vmor %vm197, %vm221
    %vm230 = vmor %vm198, %vm222
    %vm231 = vcmp.ne.s32.totalorder %v23, %v123
    %vm232 = vcmp.ne.s32.totalorder %v24, %v122
    %vm233 = vcmp.ne.s32.totalorder %v25, %v121
    %vm234 = vcmp.ne.s32.totalorder %v26, %v120
    %vm235 = vcmp.ne.s32.totalorder %v27, %v119
    %vm236 = vcmp.ne.s32.totalorder %v28, %v118
    %vm237 = vcmp.ne.s32.totalorder %v29, %v117
    %vm238 = vcmp.ne.s32.totalorder %v30, %v124
    %vm239 = vcmp.lt.s32.totalorder %v32, 63
    %vm240 = vcmp.lt.s32.totalorder %v33, 63
    %vm241 = vcmp.lt.s32.totalorder %v34, 63
    %vm242 = vcmp.lt.s32.totalorder %v35, 63
    %vm243 = vcmp.lt.s32.totalorder %v36, 63
    %vm244 = vcmp.lt.s32.totalorder %v37, 63
    %vm245 = vcmp.lt.s32.totalorder %v38, 63
    %vm246 = vcmp.lt.s32.totalorder %v39, 63
    %vm247 = vmand %vm231, %vm239
    %vm248 = vmand %vm232, %vm240
    %vm249 = vmand %vm233, %vm241
    %vm250 = vmand %vm234, %vm242
    %vm251 = vmand %vm235, %vm243
    %vm252 = vmand %vm236, %vm244
    %vm253 = vmand %vm237, %vm245
    %vm254 = vmand %vm238, %vm246
    %vm255 = vmor %vm223, %vm247
    %vm256 = vmor %vm224, %vm248
    %vm257 = vmor %vm225, %vm249
    %vm258 = vmor %vm226, %vm250
    %vm259 = vmor %vm227, %vm251
    %vm260 = vmor %vm228, %vm252
    %vm261 = vmor %vm229, %vm253
    %vm262 = vmor %vm230, %vm254
    %v263 = vsel %vm255, 1, 0
    %v264 = vsel %vm256, 1, 0
    %v265 = vsel %vm257, 1, 0
    %v266 = vsel %vm258, 1, 0
    %v267 = vsel %vm259, 1, 0
    %v268 = vsel %vm260, 1, 0
    %v269 = vsel %vm261, 1, 0
    %v270 = vsel %vm262, 1, 0
    %v271 = vcvt.s32.f32 %v263
    %v272 = vcvt.s32.f32 %v264
    %v273 = vcvt.s32.f32 %v265
    %v274 = vcvt.s32.f32 %v266
    %v275 = vcvt.s32.f32 %v267
    %v276 = vcvt.s32.f32 %v268
    %v277 = vcvt.s32.f32 %v269
    %v278 = vcvt.s32.f32 %v270
    %vm279 = vcmask 523264
    %280 = vst.msk [vmem:[#allocation5] sm:$0xff] %vm279, %v271
    %281 = vst.msk [vmem:[#allocation5 + $0x8] sm:$0xff] %vm279, %v272
    %282 = vst.msk [vmem:[#allocation5 + $0x10] sm:$0xff] %vm279, %v273
    %283 = vst.msk [vmem:[#allocation5 + $0x18] sm:$0xff] %vm279, %v274
    %284 = vst.msk [vmem:[#allocation5 + $0x20] sm:$0xff] %vm279, %v275
    %285 = vst.msk [vmem:[#allocation5 + $0x28] sm:$0xff] %vm279, %v276
    %286 = vst.msk [vmem:[#allocation5 + $0x30] sm:$0xff] %vm279, %v277
    %287 = vst.msk [vmem:[#allocation5 + $0x38] sm:$0xff] %vm279, %v278
    // Predicated region
    $region10: #{tpu_custom_call.1} parent=1 // pred_check
      _
    $region11: #{tpu_custom_call.1} parent=1 // pred_check_branch
      %289 = sbr.rel (0) target = $region13
    $region12: #{tpu_custom_call.1} parent=1 // pred_region
      %s291 = ssub.s32 1024, 1024
      %292 = vsyncadd [#allocation4], %s291
      %s293 = sshll.u32 [#allocation5], 4
      %s294 = int_to_ptr.vmem [resolvable:$true] %s293
      %299 = dma.vmem_to_hbm [thread:$0]  %s294, 1024, %s1, [#allocation4], 128, 128, 8
    $region13: #{tpu_custom_call.1} parent=1 // pred_fallthru
      _
    // Predicated region
    $region14: #{tpu_custom_call.1} parent=1 // pred_check
      _
    $region15: #{tpu_custom_call.1} parent=1 // pred_check_branch
      %301 = sbr.rel (0) target = $region17
    $region16: #{tpu_custom_call.1} parent=1 // pred_region
      %302 = dma.done [#allocation4], 1024
    $region17: #{tpu_custom_call.1} parent=1 // pred_fallthru
      _
    %303 = vsyncpa [#allocation3], 1
    %304 = vsyncpa [#allocation4], 1

</llo_original>
